<compile_context>
chip_gen: v5e
topology: v5e:2x2
jax: 0.10.0
libtpu: 0.0.40
codegen_flags: <defaults>
</compile_context>

<pallas_src>
import jax
import jax.numpy as jnp
from jax.experimental import pallas as pl
from jax.experimental.pallas import tpu as pltpu

_LANE = 128
_SUBLANE_ALIGN = 32   # legal second-to-last block dim for f32/bf16/int8 alike


def _floor_kernel(x_ref, o_ref):
    # Pure elementwise VPU work: upcast (no-op for f32) + floor.
    o_ref[...] = jnp.floor(x_ref[...].astype(jnp.float32))


def _device_defaults():
    """Return (tile_rows, min_grid_steps) tuned per TPU generation."""
    try:
        kind = jax.devices()[0].device_kind.lower()
    except Exception:
        kind = ""
    if "v7" in kind:
        # 3.2 TB/s HBM: big steps hide the ~0.35us/step overhead; >=8 steps so
        # the parallel grid axis can shard across the 2 TensorCores.
        return 16384, 8
    if "v6" in kind:
        return 8192, 4
    if "v5" in kind:
        # v5e default scoped VMEM is 16 MiB; 4096-row f32 blocks keep the
        # double-buffered in+out footprint at ~8 MiB.
        return 4096, 4
    return 4096, 4


def _choose_tile_rows(rows, requested, min_steps):
    """Pick a block row count: 32-aligned, <= requested, and small enough that
    the grid keeps >= min_steps steps when the input allows it."""
    if rows <= _SUBLANE_ALIGN:
        return rows                       # single full-extent block (always legal)
    per_step = pl.cdiv(rows, min_steps)
    cap = max(_SUBLANE_ALIGN, (per_step // _SUBLANE_ALIGN) * _SUBLANE_ALIGN)
    tr = (min(requested, cap) // _SUBLANE_ALIGN) * _SUBLANE_ALIGN
    tr = max(_SUBLANE_ALIGN, tr)
    if tr >= rows:
        return rows
    return tr


def diff_floor(x, *, tile_rows=None):
    """Straight-through floor forward pass: float32 floor(x), same shape."""
    orig_shape = x.shape
    n = x.size

    # Ragged / empty fallback: this op is pure HBM-bandwidth-bound and XLA's
    # fused elementwise floor already runs at roofline; padding it into a
    # Pallas call would only add an extra HBM pass.
    if n == 0 or n % _LANE != 0:
        return jnp.floor(x).astype(jnp.float32)

    default_tr, min_steps = _device_defaults()
    if tile_rows is None:
        tile_rows = default_tr

    rows = n // _LANE
    # Row-major reshape to a lane-dense 2D slab — no data movement.
    x2d = jnp.reshape(x, (rows, _LANE))

    tr = _choose_tile_rows(rows, tile_rows, min_steps)
    grid = (pl.cdiv(rows, tr),)

    in_itemsize = jnp.dtype(x.dtype).itemsize
    # Double-buffered input + output blocks, plus headroom; capped under v7x's
    # 64 MiB physical VMEM (v5e/v6e have 128 MiB physical, so the cap is safe).
    blk_bytes = tr * _LANE * (in_itemsize + 4)
    vmem_limit = min(max(2 * blk_bytes + (2 << 20), 16 << 20), 48 << 20)

    out2d = pl.pallas_call(
        _floor_kernel,
        out_shape=jax.ShapeDtypeStruct((rows, _LANE), jnp.float32),
        grid_spec=pltpu.PrefetchScalarGridSpec(
            num_scalar_prefetch=0,
            grid=grid,
            in_specs=[pl.BlockSpec((tr, _LANE), lambda i: (i, 0))],
            out_specs=pl.BlockSpec((tr, _LANE), lambda i: (i, 0)),
        ),
        compiler_params=pltpu.CompilerParams(
            dimension_semantics=("parallel",),
            vmem_limit_bytes=vmem_limit,
        ),
        cost_estimate=pl.CostEstimate(
            flops=n,
            transcendentals=0,
            bytes_accessed=n * in_itemsize + n * 4,
        ),
    )(x2d)

    return out2d.reshape(orig_shape)


if __name__ == "__main__":
    key = jax.random.PRNGKey(0)
    k0, k1, k2 = jax.random.split(key, 3)

    # NCHW input, consistent with conv-style usage of the module.
    x = jax.random.normal(k0, (2, 4, 16, 16), dtype=jnp.float32) * 5.0
    out = jax.block_until_ready(diff_floor(x))
    ref = jnp.floor(x).astype(jnp.float32)
    assert out.shape == x.shape
    assert out.dtype == jnp.float32
    assert jnp.array_equal(out, ref)

    # Exercise the multi-step grid + masked last block path:
    # 120 lane-rows with a 64-row tile request -> 32-row blocks, 4 steps,
    # final block masked (24 valid rows).
    x2 = jax.random.normal(k1, (40, 3 * 128), dtype=jnp.float32) * 7.0
    out2 = jax.block_until_ready(diff_floor(x2, tile_rows=64))
    assert jnp.array_equal(out2, jnp.floor(x2).astype(jnp.float32))

    # Exercise a packed (bf16) input with the 32-aligned tile rule.
    x3 = (jax.random.normal(k2, (8, 1024), dtype=jnp.float32) * 3.0).astype(jnp.bfloat16)
    out3 = jax.block_until_ready(diff_floor(x3))
    assert out3.dtype == jnp.float32
    assert jnp.array_equal(out3, jnp.floor(x3.astype(jnp.float32)))

    print("KERNEL_OK")
</pallas_src>

<mosaic_0001>
module attributes {stable_mosaic.version = 11 : i64} {
  func.func @_floor_kernel(%arg0: i32, %arg1: memref<16x128xf32, #tpu.memory_space<vmem>>, %arg2: memref<16x128xf32, #tpu.memory_space<vmem>>) attributes {dimension_semantics = [#tpu.dimension_semantics<parallel>], iteration_bounds = array<i64: 1>, scalar_prefetch = 0 : i64, scratch_operands = 0 : i64, tpu.core_type = #tpu.core_type<tc>, window_params = [{transform_indices = @transform_0, window_bounds = array<i64: 16, 128>}, {transform_indices = @transform_1, window_bounds = array<i64: 16, 128>}]} {
    %c0 = arith.constant 0 : index
    %c0_0 = arith.constant 0 : index
    %0 = vector.load %arg1[%c0, %c0_0] : memref<16x128xf32, #tpu.memory_space<vmem>>, vector<16x128xf32>
    %1 = math.floor %0 : vector<16x128xf32>
    %c0_1 = arith.constant 0 : index
    %c0_2 = arith.constant 0 : index
    %2 = vector.load %arg2[%c0_1, %c0_2] : memref<16x128xf32, #tpu.memory_space<vmem>>, vector<16x128xf32>
    tpu.vector_store %arg2[%c0_1, %c0_2], %1 {strides = array<i32>} : memref<16x128xf32, #tpu.memory_space<vmem>>, vector<16x128xf32>,
    return
  }
  func.func @transform_0(%arg0: i32) -> (i32, i32) {
    %c0_i32 = arith.constant 0 : i32
    %c0_i32_0 = arith.constant 0 : i32
    return %arg0, %c0_i32 : i32, i32
  }
  func.func @transform_1(%arg0: i32) -> (i32, i32) {
    %c0_i32 = arith.constant 0 : i32
    %c0_i32_0 = arith.constant 0 : i32
    return %arg0, %c0_i32 : i32, i32
  }
}

</mosaic_0001>

<llo_original>
// kernel: tpu_custom_call.1
$region0: #{tpu_custom_call.1}
  #allocation0 [shape = 'u32[]', space=smem, size = 0x4, offset = 0x4, fixed_abs, tag = 'smem constant byte address 0x4 - core index']
  #allocation1 [shape = 'u32[72,128]{1,0:T(1,128)}', space=vmem, size = 0x9000, scoped, tag = 'internal scratch']
  %s0 = inlined_call_operand.hbm [shape: f32[16,128], index: 0, kind: input, shape index: {}]
  %s1 = inlined_call_operand.hbm [shape: f32[16,128], index: 1, kind: output, shape index: {}]
  %s2 = sld [smem:[#allocation0]]
  $region18: #{tpu_custom_call.1} parent=0
    _
  %s4 = ssub.s32 1, %s2
  %s5 = scalar_select 0, %s4, %s2
  $region1: #{tpu_custom_call.1} parent=0
    #allocation2 [shape = 'u8[8192]{0}', space=vmem, size = 0x2000, scoped, tag = 'input window, operand 0, single buffered']
    #allocation3 [shape = 's32[1]{0}', space=sflag, size = 0x4, scoped, tag = 'scoped memory for tpu_custom_call.1']
    #allocation4 [shape = 's32[1]{0}', space=sflag, size = 0x4, scoped, tag = 'scoped memory for tpu_custom_call.1']
    #allocation5 [shape = 'u8[8192]{0}', space=vmem, size = 0x2000, scoped, tag = 'output window, operand 0, single buffered']
    %6 = vsyncpa [#allocation3], 0
    %7 = vsyncpa [#allocation4], 0
    // Predicated region
    $region2: #{tpu_custom_call.1} parent=1 // pred_check
      _
    $region3: #{tpu_custom_call.1} parent=1 // pred_check_branch
      %9 = sbr.rel (0) target = $region5
    $region4: #{tpu_custom_call.1} parent=1 // pred_region
      %11 = vsyncadd [#allocation3], 0
      %s12 = sshll.u32 %s0, 4
      %s13 = int_to_ptr.hbm [resolvable:$true] %s12
      %s14 = sshll.u32 [#allocation2], 4
      %s15 = int_to_ptr.vmem [resolvable:$true] %s14
      %20 = dma.hbm_to_vmem [thread:$0]  %s13, 256, %s15, [#allocation3], 128, 128, 8
    $region5: #{tpu_custom_call.1} parent=1 // pred_fallthru
      _
    // Predicated region
    $region6: #{tpu_custom_call.1} parent=1 // pred_check
      _
    $region7: #{tpu_custom_call.1} parent=1 // pred_check_branch
      %22 = sbr.rel (0) target = $region9
    $region8: #{tpu_custom_call.1} parent=1 // pred_region
      %24 = dma.done [#allocation3], 256
    $region9: #{tpu_custom_call.1} parent=1 // pred_fallthru
      _
    %v25 = vld [vmem:[#allocation2] sm:$0xff]
    %v26 = vld [vmem:[#allocation2 + $0x8] sm:$0xff]
    %v27 = vfloor.f32 %v25
    %v28 = vfloor.f32 %v26
    %29 = vst [vmem:[#allocation5] sm:$0xff] %v27
    %30 = vst [vmem:[#allocation5 + $0x8] sm:$0xff] %v28
    // Predicated region
    $region10: #{tpu_custom_call.1} parent=1 // pred_check
      _
    $region11: #{tpu_custom_call.1} parent=1 // pred_check_branch
      %32 = sbr.rel (0) target = $region13
    $region12: #{tpu_custom_call.1} parent=1 // pred_region
      %34 = vsyncadd [#allocation4], 0
      %s35 = sshll.u32 [#allocation5], 4
      %s36 = int_to_ptr.vmem [resolvable:$true] %s35
      %s37 = sshll.u32 %s1, 4
      %s38 = int_to_ptr.hbm [resolvable:$true] %s37
      %43 = dma.vmem_to_hbm [thread:$0]  %s36, 256, %s38, [#allocation4], 128, 128, 8
    $region13: #{tpu_custom_call.1} parent=1 // pred_fallthru
      _
    // Predicated region
    $region14: #{tpu_custom_call.1} parent=1 // pred_check
      _
    $region15: #{tpu_custom_call.1} parent=1 // pred_check_branch
      %45 = sbr.rel (0) target = $region17
    $region16: #{tpu_custom_call.1} parent=1 // pred_region
      %47 = dma.done [#allocation4], 256
    $region17: #{tpu_custom_call.1} parent=1 // pred_fallthru
      _
    %48 = vsyncpa [#allocation3], 1
    %49 = vsyncpa [#allocation4], 1

</llo_original>
